<compile_context>
chip_gen: v7x
topology: tpu7x:2x2x1
jax: 0.10.0
libtpu: 0.0.40
codegen_flags: <defaults>
</compile_context>

<pallas_src>
import jax
import jax.numpy as jnp
from jax.experimental import pallas as pl
from jax.experimental.pallas import tpu as pltpu


def _decoder_kernel(x_ref, z_ref, w1_ref, b1_ref, w2_ref, b2_ref, o_ref):
    # ---- layer 1: h = tanh(z @ W1 + b1)  (bf16 MXU -> f32 acc, tanh on EUP) ----
    h = jnp.tanh(
        jnp.dot(z_ref[...], w1_ref[...], preferred_element_type=jnp.float32)
        + b1_ref[...]
    )

    # ---- layer 2 logits: l = h @ W2 + b2 (stay in logits space) ---------------
    logits = (
        jnp.dot(h.astype(jnp.bfloat16), w2_ref[...],
                preferred_element_type=jnp.float32)
        + b2_ref[...]
    )

    # ---- stable Bernoulli log-likelihood (f32 epilogue on VPU/EUP) ------------
    #   x*log(sigmoid(l)) + (1-x)*log(1-sigmoid(l))  ==  x*l - softplus(l)
    x = x_ref[...].astype(jnp.float32)
    ll = (x * logits
          - jnp.maximum(logits, 0.0)
          - jnp.log1p(jnp.exp(-jnp.abs(logits))))

    # Per-row reduction over the feature (lane) axis, written as a lane-dense
    # (1, TB) slab.
    o_ref[...] = jnp.sum(ll, axis=1)[None, :]


def bernoulli_decoder_forward(x, z, w1, b1, w2, b2, *, tile_batch=512):
    """Returns log p(x|z), shape [batch]."""
    batch, dim_input = x.shape
    _, dim_latent = z.shape
    dim_hidden = w1.shape[1]

    # Cap the tile at the batch; single-tile small batches use full-dim blocks
    # (valid: block dims equal the array dims).  For batch > tile_batch the
    # grid has >= 2 steps, so v7x's second TensorCore gets work.
    tb = min(tile_batch, batch)
    num_tiles = pl.cdiv(batch, tb)

    # Narrow dtypes: exact for binary x; z/weights feed the bf16 MXU anyway.
    # TODO(synk): keep x in f32 if this decoder is used with continuous
    # targets in [0, 1] (bf16 then rounds the data).
    x = x.astype(jnp.bfloat16)
    z = z.astype(jnp.bfloat16)
    w1 = w1.astype(jnp.bfloat16)
    w2 = w2.astype(jnp.bfloat16)
    b1 = b1.astype(jnp.float32)
    b2 = b2.astype(jnp.float32)

    out = pl.pallas_call(
        _decoder_kernel,
        out_shape=jax.ShapeDtypeStruct((1, batch), jnp.float32),
        grid=(num_tiles,),
        in_specs=[
            pl.BlockSpec((tb, dim_input), lambda i: (i, 0)),           # x tile
            pl.BlockSpec((tb, dim_latent), lambda i: (i, 0)),          # z tile
            pl.BlockSpec((dim_latent, dim_hidden), lambda i: (0, 0)),  # W1 (resident)
            pl.BlockSpec((1, dim_hidden), lambda i: (0, 0)),           # b1 (resident)
            pl.BlockSpec((dim_hidden, dim_input), lambda i: (0, 0)),   # W2 (resident)
            pl.BlockSpec((1, dim_input), lambda i: (0, 0)),            # b2 (resident)
        ],
        # Lane-dense output row: grid step i writes columns [i*tb, (i+1)*tb);
        # OOB columns of the ragged last block are discarded by Pallas.
        out_specs=pl.BlockSpec((1, tb), lambda i: (0, i)),
        compiler_params=pltpu.CompilerParams(
            dimension_semantics=("parallel",),   # megacore sharding on v7x
        ),
    )(x, z, w1, b1, w2, b2)
    return out[0]


def init_params(key, dim_latent, dim_input, dim_hidden):
    """Deterministic synthetic parameters (shapes match the PyTorch module)."""
    k1, k2, k3, k4 = jax.random.split(key, 4)
    s1 = 1.0 / jnp.sqrt(dim_latent)
    s2 = 1.0 / jnp.sqrt(dim_hidden)
    w1 = jax.random.uniform(k1, (dim_latent, dim_hidden), jnp.float32, -s1, s1)
    b1 = jax.random.uniform(k2, (1, dim_hidden), jnp.float32, -s1, s1)
    w2 = jax.random.uniform(k3, (dim_hidden, dim_input), jnp.float32, -s2, s2)
    b2 = jax.random.uniform(k4, (1, dim_input), jnp.float32, -s2, s2)
    return w1, b1, w2, b2


def _reference(x, z, w1, b1, w2, b2):
    # Original (PyTorch) formulation, f32 throughout.
    h = jnp.tanh(z @ w1 + b1)
    y = jax.nn.sigmoid(h @ w2 + b2)
    return jnp.sum(x * jnp.log(y) + (1.0 - x) * jnp.log(1.0 - y), axis=1)


def _make_inputs(key, batch, dim_latent, dim_hidden, dim_input):
    kx, kz, kp = jax.random.split(key, 3)
    x = (jax.random.uniform(kx, (batch, dim_input)) > 0.5).astype(jnp.float32)
    z = jax.random.normal(kz, (batch, dim_latent), jnp.float32)
    params = init_params(kp, dim_latent, dim_input, dim_hidden)
    return x, z, params


if __name__ == "__main__":
    key = jax.random.PRNGKey(0)
    k_small, k_big = jax.random.split(key)

    # ---- small-shape test (single tile, full-dim blocks) ----------------------
    batch, dim_latent, dim_hidden, dim_input = 2, 8, 32, 16
    x, z, (w1, b1, w2, b2) = _make_inputs(k_small, batch, dim_latent,
                                          dim_hidden, dim_input)
    out = bernoulli_decoder_forward(x, z, w1, b1, w2, b2)
    jax.block_until_ready(out)
    ref = _reference(x, z, w1, b1, w2, b2)
    assert out.shape == (batch,)
    # bf16 MXU operands (f32 accumulate) vs. the pure-f32 reference.
    assert jnp.allclose(out, ref, atol=5e-2, rtol=2e-2), (out, ref)

    # ---- multi-tile test: ragged last tile + resident weights across steps ----
    batch, dim_latent, dim_hidden, dim_input = 300, 16, 128, 256
    x, z, (w1, b1, w2, b2) = _make_inputs(k_big, batch, dim_latent,
                                          dim_hidden, dim_input)
    out = bernoulli_decoder_forward(x, z, w1, b1, w2, b2, tile_batch=128)
    jax.block_until_ready(out)
    ref = _reference(x, z, w1, b1, w2, b2)
    assert out.shape == (batch,)
    assert jnp.allclose(out, ref, atol=0.5, rtol=3e-2), (out, ref)

    print("KERNEL_OK")
</pallas_src>

<mosaic_0001>
module attributes {stable_mosaic.version = 11 : i64} {
  func.func @_decoder_kernel(%arg0: i32, %arg1: memref<2x16xbf16, #tpu.memory_space<vmem>>, %arg2: memref<2x8xbf16, #tpu.memory_space<vmem>>, %arg3: memref<8x32xbf16, #tpu.memory_space<vmem>>, %arg4: memref<1x32xf32, #tpu.memory_space<vmem>>, %arg5: memref<32x16xbf16, #tpu.memory_space<vmem>>, %arg6: memref<1x16xf32, #tpu.memory_space<vmem>>, %arg7: memref<1x2xf32, #tpu.memory_space<vmem>>) attributes {dimension_semantics = [#tpu.dimension_semantics<parallel>], iteration_bounds = array<i64: 1>, scalar_prefetch = 0 : i64, scratch_operands = 0 : i64, tpu.core_type = #tpu.core_type<tc>, window_params = [{transform_indices = @transform_0, window_bounds = array<i64: 2, 16>}, {transform_indices = @transform_1, window_bounds = array<i64: 2, 8>}, {pipeline_mode = #tpu.pipeline_mode<synchronous>, transform_indices = @transform_2, window_bounds = array<i64: 8, 32>}, {pipeline_mode = #tpu.pipeline_mode<synchronous>, transform_indices = @transform_3, window_bounds = array<i64: 1, 32>}, {pipeline_mode = #tpu.pipeline_mode<synchronous>, transform_indices = @transform_4, window_bounds = array<i64: 32, 16>}, {pipeline_mode = #tpu.pipeline_mode<synchronous>, transform_indices = @transform_5, window_bounds = array<i64: 1, 16>}, {transform_indices = @transform_6, window_bounds = array<i64: 1, 2>}]} {
    %c0 = arith.constant 0 : index
    %c0_0 = arith.constant 0 : index
    %0 = vector.load %arg2[%c0, %c0_0] : memref<2x8xbf16, #tpu.memory_space<vmem>>, vector<2x8xbf16>
    %c0_1 = arith.constant 0 : index
    %c0_2 = arith.constant 0 : index
    %1 = vector.load %arg3[%c0_1, %c0_2] : memref<8x32xbf16, #tpu.memory_space<vmem>>, vector<8x32xbf16>
    %cst = arith.constant dense<0.000000e+00> : vector<2x32xf32>
    %2 = tpu.matmul %0, %1, %cst {dimension_numbers = #tpu.dot_dimension_numbers<[1], [0], [0], [1], [0, 0, 1, 1], [], []>} : vector<2x8xbf16>, vector<8x32xbf16>, vector<2x32xf32> -> vector<2x32xf32>
    %c0_3 = arith.constant 0 : index
    %c0_4 = arith.constant 0 : index
    %3 = vector.load %arg4[%c0_3, %c0_4] : memref<1x32xf32, #tpu.memory_space<vmem>>, vector<1x32xf32>
    %4 = vector.broadcast %3 : vector<1x32xf32> to vector<2x32xf32>
    %5 = arith.addf %2, %4 : vector<2x32xf32>
    %6 = math.tanh %5 : vector<2x32xf32>
    %7 = arith.truncf %6 : vector<2x32xf32> to vector<2x32xbf16>
    %c0_5 = arith.constant 0 : index
    %c0_6 = arith.constant 0 : index
    %8 = vector.load %arg5[%c0_5, %c0_6] : memref<32x16xbf16, #tpu.memory_space<vmem>>, vector<32x16xbf16>
    %cst_7 = arith.constant dense<0.000000e+00> : vector<2x16xf32>
    %9 = tpu.matmul %7, %8, %cst_7 {dimension_numbers = #tpu.dot_dimension_numbers<[1], [0], [0], [1], [0, 0, 1, 1], [], []>} : vector<2x32xbf16>, vector<32x16xbf16>, vector<2x16xf32> -> vector<2x16xf32>
    %c0_8 = arith.constant 0 : index
    %c0_9 = arith.constant 0 : index
    %10 = vector.load %arg6[%c0_8, %c0_9] : memref<1x16xf32, #tpu.memory_space<vmem>>, vector<1x16xf32>
    %11 = vector.broadcast %10 : vector<1x16xf32> to vector<2x16xf32>
    %12 = arith.addf %9, %11 : vector<2x16xf32>
    %c0_10 = arith.constant 0 : index
    %c0_11 = arith.constant 0 : index
    %13 = vector.load %arg1[%c0_10, %c0_11] : memref<2x16xbf16, #tpu.memory_space<vmem>>, vector<2x16xbf16>
    %14 = arith.extf %13 : vector<2x16xbf16> to vector<2x16xf32>
    %15 = arith.mulf %14, %12 : vector<2x16xf32>
    %cst_12 = arith.constant 0.000000e+00 : f32
    %16 = vector.broadcast %cst_12 : f32 to vector<2x16xf32>
    %17 = arith.maximumf %12, %16 : vector<2x16xf32>
    %18 = arith.subf %15, %17 : vector<2x16xf32>
    %19 = math.absf %12 : vector<2x16xf32>
    %cst_13 = arith.constant 0.000000e+00 : f32
    %20 = vector.broadcast %cst_13 : f32 to vector<2x16xf32>
    %21 = arith.subf %20, %19 : vector<2x16xf32>
    %22 = math.exp %21 : vector<2x16xf32>
    %23 = math.log1p %22 : vector<2x16xf32>
    %24 = arith.subf %18, %23 : vector<2x16xf32>
    %cst_14 = arith.constant dense<0.000000e+00> : vector<2xf32>
    %25 = vector.multi_reduction <add>, %24, %cst_14 [1] : vector<2x16xf32> to vector<2xf32>
    %26 = vector.shape_cast %25 : vector<2xf32> to vector<1x2xf32>
    %c0_15 = arith.constant 0 : index
    %c0_16 = arith.constant 0 : index
    %27 = vector.load %arg7[%c0_15, %c0_16] : memref<1x2xf32, #tpu.memory_space<vmem>>, vector<1x2xf32>
    tpu.vector_store %arg7[%c0_15, %c0_16], %26 {strides = array<i32>} : memref<1x2xf32, #tpu.memory_space<vmem>>, vector<1x2xf32>,
    return
  }
  func.func @transform_0(%arg0: i32) -> (i32, i32) {
    %c0_i32 = arith.constant 0 : i32
    %c0_i32_0 = arith.constant 0 : i32
    return %arg0, %c0_i32 : i32, i32
  }
  func.func @transform_1(%arg0: i32) -> (i32, i32) {
    %c0_i32 = arith.constant 0 : i32
    %c0_i32_0 = arith.constant 0 : i32
    return %arg0, %c0_i32 : i32, i32
  }
  func.func @transform_2(%arg0: i32) -> (i32, i32) {
    %c0_i32 = arith.constant 0 : i32
    %c0_i32_0 = arith.constant 0 : i32
    %c0_i32_1 = arith.constant 0 : i32
    return %c0_i32, %c0_i32_0 : i32, i32
  }
  func.func @transform_3(%arg0: i32) -> (i32, i32) {
    %c0_i32 = arith.constant 0 : i32
    %c0_i32_0 = arith.constant 0 : i32
    %c0_i32_1 = arith.constant 0 : i32
    return %c0_i32, %c0_i32_0 : i32, i32
  }
  func.func @transform_4(%arg0: i32) -> (i32, i32) {
    %c0_i32 = arith.constant 0 : i32
    %c0_i32_0 = arith.constant 0 : i32
    %c0_i32_1 = arith.constant 0 : i32
    return %c0_i32, %c0_i32_0 : i32, i32
  }
  func.func @transform_5(%arg0: i32) -> (i32, i32) {
    %c0_i32 = arith.constant 0 : i32
    %c0_i32_0 = arith.constant 0 : i32
    %c0_i32_1 = arith.constant 0 : i32
    return %c0_i32, %c0_i32_0 : i32, i32
  }
  func.func @transform_6(%arg0: i32) -> (i32, i32) {
    %c0_i32 = arith.constant 0 : i32
    %c0_i32_0 = arith.constant 0 : i32
    return %c0_i32, %arg0 : i32, i32
  }
}

</mosaic_0001>

<llo_original>
// kernel: tpu_custom_call.1
$region0: #{tpu_custom_call.1}
  #allocation0 [shape = 'u32[]', space=smem, size = 0x4, offset = 0x4, fixed_abs, tag = 'smem constant byte address 0x4 - core index']
  #allocation1 [shape = 'u32[144,128]{1,0:T(1,128)}', space=vmem, size = 0x12000, scoped, tag = 'internal scratch']
  %s0 = inlined_call_operand.vmem [shape: bf16[2,16], index: 0, kind: input, shape index: {}]
  %s1 = inlined_call_operand.vmem [shape: bf16[2,8], index: 1, kind: input, shape index: {}]
  %s2 = inlined_call_operand.vmem [shape: bf16[8,32], index: 2, kind: input, shape index: {}]
  %s3 = inlined_call_operand.vmem [shape: f32[1,32], index: 3, kind: input, shape index: {}]
  %s4 = inlined_call_operand.vmem [shape: bf16[32,16], index: 4, kind: input, shape index: {}]
  %s5 = inlined_call_operand.vmem [shape: f32[1,16], index: 5, kind: input, shape index: {}]
  %s6 = inlined_call_operand.hbm [shape: f32[1,2], index: 6, kind: output, shape index: {}]
  %s7 = sld [smem:[#allocation0]]
  $region34: #{tpu_custom_call.1} parent=0
    _
  %s9 = ssub.s32 1, %s7
  %s10 = scalar_select 0, %s9, %s7
  $region1: #{tpu_custom_call.1} parent=0
    #allocation2 [shape = 'u8[512]{0}', space=vmem, size = 0x400, scoped, tag = 'output window, operand 0, single buffered']
    #allocation3 [shape = 's32[1]{0}', space=sflag, size = 0x4, scoped, tag = 'scoped memory for tpu_custom_call.1']
    %11 = vsyncpa [#allocation3], 0
    // Predicated region
    $region2: #{tpu_custom_call.1} parent=1 // pred_check
      _
    $region3: #{tpu_custom_call.1} parent=1 // pred_check_branch
      %13 = sbr.rel (0) target = $region5
    $region4: #{tpu_custom_call.1} parent=1 // pred_region
      _
    $region5: #{tpu_custom_call.1} parent=1 // pred_fallthru
      _
    // Predicated region
    $region6: #{tpu_custom_call.1} parent=1 // pred_check
      _
    $region7: #{tpu_custom_call.1} parent=1 // pred_check_branch
      %15 = sbr.rel (0) target = $region9
    $region8: #{tpu_custom_call.1} parent=1 // pred_region
      _
    $region9: #{tpu_custom_call.1} parent=1 // pred_fallthru
      _
    // Predicated region
    $region10: #{tpu_custom_call.1} parent=1 // pred_check
      _
    $region11: #{tpu_custom_call.1} parent=1 // pred_check_branch
      %17 = sbr.rel (0) target = $region13
    $region12: #{tpu_custom_call.1} parent=1 // pred_region
      _
    $region13: #{tpu_custom_call.1} parent=1 // pred_fallthru
      _
    // Predicated region
    $region14: #{tpu_custom_call.1} parent=1 // pred_check
      _
    $region15: #{tpu_custom_call.1} parent=1 // pred_check_branch
      %19 = sbr.rel (0) target = $region17
    $region16: #{tpu_custom_call.1} parent=1 // pred_region
      _
    $region17: #{tpu_custom_call.1} parent=1 // pred_fallthru
      _
    // Predicated region
    $region18: #{tpu_custom_call.1} parent=1 // pred_check
      _
    $region19: #{tpu_custom_call.1} parent=1 // pred_check_branch
      %21 = sbr.rel (0) target = $region21
    $region20: #{tpu_custom_call.1} parent=1 // pred_region
      _
    $region21: #{tpu_custom_call.1} parent=1 // pred_fallthru
      _
    // Predicated region
    $region22: #{tpu_custom_call.1} parent=1 // pred_check
      _
    $region23: #{tpu_custom_call.1} parent=1 // pred_check_branch
      %23 = sbr.rel (0) target = $region25
    $region24: #{tpu_custom_call.1} parent=1 // pred_region
      _
    $region25: #{tpu_custom_call.1} parent=1 // pred_fallthru
      _
    %v25 = vld [vmem:[%s1] sm:$0x1]
    %v26 = vld [vmem:[%s2] sm:$0xf]
    %v27 = vld [vmem:[%s3] sm:$0x1]
    %v29 = vlaneseq
    %v30 = vshrl.u32 %v29, 7
    %v31 = vsub.s32 0, %v30
    %v32 = vrot.slane %v27, %v31
    %vm34 = vcmask 64512
    %v36 = vsel %vm34, %v25, 0
    %vm38 = vcmask 1043456
    %v40 = vsel %vm38, %v26, 0
    %42 = vmatprep.subr.bf16.mxu0 0
    %43 = vmatpush1.bf16.msra.mxu0 %v40
    %44 = vmatprep.subr.bf16.mxu0 0
    %45 = vmatpush1.bf16.msra.mxu0 0
    %46 = vmatprep.subr.bf16.mxu0 0
    %47 = vmatpush1.bf16.msra.mxu0 0
    %48 = vmatprep.subr.bf16.mxu0 0
    %49 = vmatpush1.bf16.msra.mxu0 0
    %50 = vmatprep.subr.bf16.mxu0 0
    %51 = vmatpush1.bf16.msra.mxu0 0
    %52 = vmatprep.subr.bf16.mxu0 0
    %53 = vmatpush1.bf16.msra.mxu0 0
    %54 = vmatprep.subr.bf16.mxu0 0
    %55 = vmatpush1.bf16.msra.mxu0 0
    %56 = vmatprep.subr.bf16.mxu0 0
    %57 = vmatpush1.bf16.msra.mxu0 0
    %58 = vmatprep.subr.bf16.mxu0 0
    %59 = vmatpush1.bf16.msra.mxu0 0
    %60 = vmatprep.subr.bf16.mxu0 0
    %61 = vmatpush1.bf16.msra.mxu0 0
    %62 = vmatprep.subr.bf16.mxu0 0
    %63 = vmatpush1.bf16.msra.mxu0 0
    %64 = vmatprep.subr.bf16.mxu0 0
    %65 = vmatpush1.bf16.msra.mxu0 0
    %66 = vmatprep.subr.bf16.mxu0 0
    %67 = vmatpush1.bf16.msra.mxu0 0
    %68 = vmatprep.subr.bf16.mxu0 0
    %69 = vmatpush1.bf16.msra.mxu0 0
    %70 = vmatprep.subr.bf16.mxu0 0
    %71 = vmatpush1.bf16.msra.mxu0 0
    %72 = vmatprep.subr.bf16.mxu0 0
    %73 = vmatpush1.bf16.msra.mxu0 0
    %74 = vmatprep.mubr.bf16.mxu0 0
    %75 = vmatmul.mubr.bf16.gmra.mrb[0].mxu0 %v36
    %v76 = vpop.f32.mrb[0].mxu0
    %v77 = vadd.f32 %v32, %v76
    %v78 = vpop.f32.mrb[0].mxu0
    %v79 = vpop.f32.mrb[0].mxu0
    %v80 = vpop.f32.mrb[0].mxu0
    %81 = vdwg.mxu0
    %v82 = vtanh.pop %v77
    %v83 = vpack.c.bf16 %v82, %v82
    %v84 = vld [vmem:[%s4] sm:$0xf]
    %v85 = vld [vmem:[%s4 + $0x4] sm:$0xf]
    %v86 = vld [vmem:[%s4 + $0x8] sm:$0xf]
    %v87 = vld [vmem:[%s4 + $0xc] sm:$0xf]
    %v88 = vld [vmem:[%s5] sm:$0x1]
    %v90 = vlaneseq
    %v91 = vshrl.u32 %v90, 7
    %v92 = vsub.s32 0, %v91
    %v93 = vrot.slane %v88, %v92
    %v99 = vunpack.c.l.b16 %v84
    %v100 = vunpack.c.l.b16 %v85
    %v101 = vunpack.c.l.b16 %v86
    %v102 = vunpack.c.l.b16 %v87
    %v103 = vpack.c.b16 %v100, %v99
    %v104 = vpack.c.b16 %v102, %v101
    %vm107 = vcmask 261120
    %v109 = vsel %vm107, %v83, 0
    %111 = vmatprep.subr.bf16.mxu0 0
    %112 = vmatpush1.bf16.msra.mxu0 %v103
    %113 = vmatprep.subr.bf16.mxu0 0
    %114 = vmatpush1.bf16.msra.mxu0 %v104
    %115 = vmatprep.subr.bf16.mxu0 0
    %116 = vmatpush1.bf16.msra.mxu0 0
    %117 = vmatprep.subr.bf16.mxu0 0
    %118 = vmatpush1.bf16.msra.mxu0 0
    %119 = vmatprep.subr.bf16.mxu0 0
    %120 = vmatpush1.bf16.msra.mxu0 0
    %121 = vmatprep.subr.bf16.mxu0 0
    %122 = vmatpush1.bf16.msra.mxu0 0
    %123 = vmatprep.subr.bf16.mxu0 0
    %124 = vmatpush1.bf16.msra.mxu0 0
    %125 = vmatprep.subr.bf16.mxu0 0
    %126 = vmatpush1.bf16.msra.mxu0 0
    %127 = vmatprep.subr.bf16.mxu0 0
    %128 = vmatpush1.bf16.msra.mxu0 0
    %129 = vmatprep.subr.bf16.mxu0 0
    %130 = vmatpush1.bf16.msra.mxu0 0
    %131 = vmatprep.subr.bf16.mxu0 0
    %132 = vmatpush1.bf16.msra.mxu0 0
    %133 = vmatprep.subr.bf16.mxu0 0
    %134 = vmatpush1.bf16.msra.mxu0 0
    %135 = vmatprep.subr.bf16.mxu0 0
    %136 = vmatpush1.bf16.msra.mxu0 0
    %137 = vmatprep.subr.bf16.mxu0 0
    %138 = vmatpush1.bf16.msra.mxu0 0
    %139 = vmatprep.subr.bf16.mxu0 0
    %140 = vmatpush1.bf16.msra.mxu0 0
    %141 = vmatprep.subr.bf16.mxu0 0
    %142 = vmatpush1.bf16.msra.mxu0 0
    %143 = vmatprep.mubr.bf16.mxu0 0
    %144 = vmatmul.mubr.bf16.gmra.mrb[0].mxu0 %v109
    %v145 = vpop.f32.mrb[0].mxu0
    %v146 = vadd.f32 %v93, %v145
    %v147 = vpop.f32.mrb[0].mxu0
    %v148 = vpop.f32.mrb[0].mxu0
    %v149 = vpop.f32.mrb[0].mxu0
    %150 = vdwg.mxu0
    %v151 = vld [vmem:[%s0] sm:$0x1]
    %v152 = vunpack.c.l.bf16 %v151
    %v153 = vmul.f32 %v152, %v146
    %v154 = vmax.f32 %v146, 0.0
    %v155 = vsub.f32 %v153, %v154
    %v156 = vand.u32 2147483647, %v146
    %v157 = vsub.f32 0.0, %v156
    %v158 = vmul.f32 %v157, 1.442695
    %v159 = vpow.pop %v158
    %v160 = vadd.f32 %v159, 1.0
    %v161 = vlog2.pop %v160
    %v162 = vmul.f32 %v161, 0.6931472
    %v163 = vmul.f32 -0.5, %v159
    %v164 = vadd.f32 %v163, 1.0
    %v165 = vmul.f32 %v164, %v159
    %v166 = vand.u32 2147483647, %v159
    %vm167 = vcmp.lt.f32.partialorder %v166, 0.0004427343
    %v168 = vsel %vm167, %v165, %v162
    %v169 = vsub.f32 %v155, %v168
    %vm170 = vcmask 123904
    %v171 = vsel %vm170, %v169, 0.0
    %172 = vadd.xlane.f32.xlu0 %v171
    %v173 = vpop.xlane.xlu0 %172
    %v175 = vlaneseq
    %v176 = vand.u32 %v175, 127
    %v177 = vlaneseq
    %v178 = vshrl.u32 %v177, 7
    %v179 = vsub.s32 %v176, %v178
    %v180 = vrot.slane %v173, %v179
    %vm182 = vcmask 8192
    %183 = vst.msk [vmem:[#allocation2] sm:$0x1] %vm182, %v180
    // Predicated region
    $region26: #{tpu_custom_call.1} parent=1 // pred_check
      _
    $region27: #{tpu_custom_call.1} parent=1 // pred_check_branch
      %185 = sbr.rel (0) target = $region29
    $region28: #{tpu_custom_call.1} parent=1 // pred_region
      %s187 = ssub.s32 16, 16
      %188 = vsyncadd [#allocation3], %s187
      %s190 = sshll.u32 [#allocation2], 4
      %s191 = int_to_ptr.vmem [resolvable:$true] %s190
      %193 = dma.vmem_to_hbm [thread:$0]  %s191, 16, %s6, [#allocation3]
    $region29: #{tpu_custom_call.1} parent=1 // pred_fallthru
      _
    // Predicated region
    $region30: #{tpu_custom_call.1} parent=1 // pred_check
      _
    $region31: #{tpu_custom_call.1} parent=1 // pred_check_branch
      %195 = sbr.rel (0) target = $region33
    $region32: #{tpu_custom_call.1} parent=1 // pred_region
      %196 = dma.done [#allocation3], 16
    $region33: #{tpu_custom_call.1} parent=1 // pred_fallthru
      _
    %197 = vsyncpa [#allocation3], 1

</llo_original>
